<compile_context>
chip_gen: v5e
topology: v5e:2x2
jax: 0.10.0
libtpu: 0.0.40
codegen_flags: <defaults>
</compile_context>

<pallas_src>
import functools

import jax
import jax.numpy as jnp
from jax.experimental import pallas as pl
from jax.experimental.pallas import tpu as pltpu


# ----------------------------- tiling helpers --------------------------------


def _choose_tile(dim: int, preferred: int, multiple: int) -> int:
    """Largest divisor of `dim` that is <= `preferred` and a multiple of
    `multiple`; falls back to the full extent (always legal)."""
    if dim <= preferred:
        return dim
    t = (preferred // multiple) * multiple
    while t >= multiple:
        if dim % t == 0:
            return t
        t -= multiple
    return dim


# ----------------------------- kernels ----------------------------------------


def gate_kernel(x_ref, wg_ref, logits_ref):
    # x tile: [TT, H], wg: [H, E] -> logits tile: [TT, E]
    logits_ref[...] = jnp.dot(
        x_ref[...], wg_ref[...], preferred_element_type=jnp.float32
    ).astype(logits_ref.dtype)


def moe_kernel(x_ref, wfc_ref, wproj_ref, rw_ref, bias_ref, out_ref, acc_ref):
    # grid = (token_tiles, E, I_tiles); axes 1 and 2 are the reduction.
    e = pl.program_id(1)
    i = pl.program_id(2)
    n_e = pl.num_programs(1)
    n_i = pl.num_programs(2)

    @pl.when(jnp.logical_and(e == 0, i == 0))
    def _():
        acc_ref[...] = jnp.zeros_like(acc_ref)

    # expert MLP chunk: gelu_tanh(x @ w_fc[:, i_chunk]) @ w_proj[i_chunk, :]
    h = jnp.dot(x_ref[...], wfc_ref[0], preferred_element_type=jnp.float32)
    h = jax.nn.gelu(h, approximate=True)  # gelu_pytorch_tanh
    y = jnp.dot(
        h.astype(x_ref.dtype), wproj_ref[0], preferred_element_type=jnp.float32
    )

    # per-token routing weight for this expert, already laid out as [TT, 1]
    w_e = rw_ref[0].astype(jnp.float32)
    acc_ref[...] += y * w_e

    @pl.when(jnp.logical_and(e == n_e - 1, i == n_i - 1))
    def _():
        out_ref[...] = (
            acc_ref[...] + bias_ref[...].astype(jnp.float32)
        ).astype(out_ref.dtype)


# ----------------------------- wrapper -----------------------------------------


@functools.partial(jax.jit, static_argnames=("top_k", "normalize_expert_weights"))
def sparse_moe_forward(
    hidden_states,  # [B, S, H]
    w_gate,         # [H, E]
    w_fc,           # [E, H, I]
    w_proj,         # [E, I, H]
    bias,           # [1, H]
    *,
    top_k: int,
    normalize_expert_weights: bool,
):
    B, S, H = hidden_states.shape
    E = w_gate.shape[1]
    I = w_fc.shape[2]
    T = B * S
    x = hidden_states.reshape(T, H)

    # token tile (sublane axis) and intermediate tile (lane axis of w_fc)
    TT = _choose_tile(T, 256, 8)
    TI = _choose_tile(I, 256, 128)
    nT = T // TT
    nI = I // TI

    # --- router logits (tiled Pallas gate matmul) ---
    router_logits = pl.pallas_call(
        gate_kernel,
        out_shape=jax.ShapeDtypeStruct((T, E), x.dtype),
        grid=(nT,),
        in_specs=[
            pl.BlockSpec((TT, H), lambda t: (t, 0)),
            pl.BlockSpec((H, E), lambda t: (0, 0)),
        ],
        out_specs=pl.BlockSpec((TT, E), lambda t: (t, 0)),
        compiler_params=pltpu.CompilerParams(dimension_semantics=("parallel",)),
    )(x, w_gate)

    # --- routing glue: softmax(f32) + top-k (plain JAX control logic) ---
    probs = jax.nn.softmax(router_logits.astype(jnp.float32), axis=-1)
    if top_k == 1:
        topk_w = jnp.max(probs, axis=-1, keepdims=True)
        sel = jnp.argmax(probs, axis=-1, keepdims=True)
    else:
        topk_w, sel = jax.lax.top_k(probs, top_k)
    if normalize_expert_weights:
        topk_w = topk_w / jnp.sum(topk_w, axis=-1, keepdims=True)
    topk_w = topk_w.astype(x.dtype)

    # Dense routing weights laid out as [E, T, 1]: tokens sit on the sublane
    # axis so the kernel reads a per-row scale slice with no in-kernel
    # relayout.  one_hot + einsum sums duplicate expert indices instead of
    # overwriting (safe even if routing logic changes).
    onehot = jax.nn.one_hot(sel, E, dtype=topk_w.dtype)      # [T, K, E]
    rw_dense = jnp.einsum("tke,tk->te", onehot, topk_w)      # [T, E]
    rw_t = rw_dense.T.reshape(E, T, 1).astype(x.dtype)       # [E, T, 1]

    # --- VMEM budget / cost estimate ---
    itemsize = x.dtype.itemsize
    vmem_est = (
        TT * H * 4                              # f32 accumulator
        + 2 * TT * H * itemsize * 2             # x + out (double-buffered)
        + 2 * 2 * H * TI * itemsize             # w_fc + w_proj tiles, double-buffered
        + 2 * (TT + H) * itemsize + 4096        # routing slice + bias + slack
    )
    vmem_limit = int(min(max(vmem_est + (16 << 20), 32 << 20), 56 << 20))

    cost = pl.CostEstimate(
        flops=4 * T * E * H * I,
        transcendentals=T * E * I,
        bytes_accessed=int(
            itemsize * (nT * E * 2 * H * I + 2 * T * H + E * T)
        ),
    )

    # --- expert MLPs + weighted combine (Pallas, tiled) ---
    out = pl.pallas_call(
        moe_kernel,
        out_shape=jax.ShapeDtypeStruct((T, H), x.dtype),
        grid_spec=pltpu.PrefetchScalarGridSpec(
            num_scalar_prefetch=0,
            grid=(nT, E, nI),
            in_specs=[
                pl.BlockSpec((TT, H), lambda t, e, i: (t, 0)),        # x (resident per token tile)
                pl.BlockSpec((1, H, TI), lambda t, e, i: (e, 0, i)),  # w_fc[e], I-chunk
                pl.BlockSpec((1, TI, H), lambda t, e, i: (e, i, 0)),  # w_proj[e], I-chunk
                pl.BlockSpec((1, TT, 1), lambda t, e, i: (e, t, 0)),  # routing weights slice
                pl.BlockSpec((1, H), lambda t, e, i: (0, 0)),         # bias
            ],
            out_specs=pl.BlockSpec((TT, H), lambda t, e, i: (t, 0)),
            scratch_shapes=[pltpu.VMEM((TT, H), jnp.float32)],
        ),
        compiler_params=pltpu.CompilerParams(
            dimension_semantics=("parallel", "arbitrary", "arbitrary"),
            vmem_limit_bytes=vmem_limit,
        ),
        cost_estimate=cost,
    )(x, w_fc, w_proj, rw_t, bias)

    final_hidden_states = out.reshape(B, S, H)
    return final_hidden_states, router_logits


# ----------------------------- reference (plain JAX) ---------------------------


def sparse_moe_reference(hidden_states, w_gate, w_fc, w_proj, bias, *, top_k,
                         normalize_expert_weights):
    B, S, H = hidden_states.shape
    E = w_gate.shape[1]
    x = hidden_states.reshape(-1, H)
    logits = x @ w_gate
    probs = jax.nn.softmax(logits.astype(jnp.float32), axis=-1)
    topk_w, sel = jax.lax.top_k(probs, top_k)
    if normalize_expert_weights:
        topk_w = topk_w / jnp.sum(topk_w, axis=-1, keepdims=True)
    topk_w = topk_w.astype(x.dtype)
    rw = jnp.zeros((x.shape[0], E), x.dtype).at[
        jnp.arange(x.shape[0])[:, None], sel
    ].set(topk_w)
    out = jnp.zeros_like(x)
    for e in range(E):
        y = jax.nn.gelu(x @ w_fc[e], approximate=True) @ w_proj[e]
        out = out + y * rw[:, e][:, None]
    out = out + bias[0]
    return out.reshape(B, S, H), logits


# ----------------------------- main ---------------------------------------------


if __name__ == "__main__":
    # small config consistent with MoEDolomiteConfig defaults (scaled down)
    batch_size, seq_len, hidden_size = 2, 8, 32
    num_experts, top_k = 4, 2
    intermediate_size = 4 * hidden_size  # 128
    normalize_expert_weights = False
    dtype = jnp.float32

    key = jax.random.PRNGKey(0)
    k_x, k_g, k_fc, k_pr = jax.random.split(key, 4)

    hidden_states = jax.random.normal(k_x, (batch_size, seq_len, hidden_size), dtype)
    w_gate = 0.05 * jax.random.normal(k_g, (hidden_size, num_experts), dtype)
    w_fc = 0.05 * jax.random.normal(
        k_fc, (num_experts, hidden_size, intermediate_size), dtype
    )
    w_proj = 0.05 * jax.random.normal(
        k_pr, (num_experts, intermediate_size, hidden_size), dtype
    )
    bias = jnp.zeros((1, hidden_size), dtype)  # config.add_bias -> zeros init

    out, router_logits = sparse_moe_forward(
        hidden_states, w_gate, w_fc, w_proj, bias,
        top_k=top_k, normalize_expert_weights=normalize_expert_weights,
    )
    jax.block_until_ready((out, router_logits))

    ref_out, ref_logits = sparse_moe_reference(
        hidden_states, w_gate, w_fc, w_proj, bias,
        top_k=top_k, normalize_expert_weights=normalize_expert_weights,
    )
    assert out.shape == (batch_size, seq_len, hidden_size)
    assert router_logits.shape == (batch_size * seq_len, num_experts)
    assert jnp.allclose(out, ref_out, atol=1e-4, rtol=1e-4)
    assert jnp.allclose(router_logits, ref_logits, atol=1e-4, rtol=1e-4)

    print("KERNEL_OK")
</pallas_src>

<mosaic_0001>
module attributes {stable_mosaic.version = 11 : i64} {
  func.func @gate_kernel(%arg0: i32, %arg1: memref<16x32xf32, #tpu.memory_space<vmem>>, %arg2: memref<32x4xf32, #tpu.memory_space<vmem>>, %arg3: memref<16x4xf32, #tpu.memory_space<vmem>>) attributes {dimension_semantics = [#tpu.dimension_semantics<parallel>], iteration_bounds = array<i64: 1>, scalar_prefetch = 0 : i64, scratch_operands = 0 : i64, tpu.core_type = #tpu.core_type<tc>, window_params = [{transform_indices = @transform_0, window_bounds = array<i64: 16, 32>}, {pipeline_mode = #tpu.pipeline_mode<synchronous>, transform_indices = @transform_1, window_bounds = array<i64: 32, 4>}, {transform_indices = @transform_2, window_bounds = array<i64: 16, 4>}]} {
    %c0 = arith.constant 0 : index
    %c0_0 = arith.constant 0 : index
    %0 = vector.load %arg1[%c0, %c0_0] : memref<16x32xf32, #tpu.memory_space<vmem>>, vector<16x32xf32>
    %c0_1 = arith.constant 0 : index
    %c0_2 = arith.constant 0 : index
    %1 = vector.load %arg2[%c0_1, %c0_2] : memref<32x4xf32, #tpu.memory_space<vmem>>, vector<32x4xf32>
    %cst = arith.constant dense<0.000000e+00> : vector<16x4xf32>
    %2 = tpu.matmul %0, %1, %cst {dimension_numbers = #tpu.dot_dimension_numbers<[1], [0], [0], [1], [0, 0, 1, 1], [], []>} : vector<16x32xf32>, vector<32x4xf32>, vector<16x4xf32> -> vector<16x4xf32>
    %c0_3 = arith.constant 0 : index
    %c0_4 = arith.constant 0 : index
    %3 = vector.load %arg3[%c0_3, %c0_4] : memref<16x4xf32, #tpu.memory_space<vmem>>, vector<16x4xf32>
    tpu.vector_store %arg3[%c0_3, %c0_4], %2 {strides = array<i32>} : memref<16x4xf32, #tpu.memory_space<vmem>>, vector<16x4xf32>,
    return
  }
  func.func @transform_0(%arg0: i32) -> (i32, i32) {
    %c0_i32 = arith.constant 0 : i32
    %c0_i32_0 = arith.constant 0 : i32
    return %arg0, %c0_i32 : i32, i32
  }
  func.func @transform_1(%arg0: i32) -> (i32, i32) {
    %c0_i32 = arith.constant 0 : i32
    %c0_i32_0 = arith.constant 0 : i32
    %c0_i32_1 = arith.constant 0 : i32
    return %c0_i32, %c0_i32_0 : i32, i32
  }
  func.func @transform_2(%arg0: i32) -> (i32, i32) {
    %c0_i32 = arith.constant 0 : i32
    %c0_i32_0 = arith.constant 0 : i32
    return %arg0, %c0_i32 : i32, i32
  }
}

module attributes {stable_mosaic.version = 11 : i64} {
  func.func @moe_kernel(%arg0: i32, %arg1: i32, %arg2: i32, %arg3: memref<16x32xf32, #tpu.memory_space<vmem>>, %arg4: memref<1x32x128xf32, #tpu.memory_space<vmem>>, %arg5: memref<1x128x32xf32, #tpu.memory_space<vmem>>, %arg6: memref<1x16x1xf32, #tpu.memory_space<vmem>>, %arg7: memref<1x32xf32, #tpu.memory_space<vmem>>, %arg8: memref<16x32xf32, #tpu.memory_space<vmem>>, %arg9: memref<16x32xf32, #tpu.memory_space<vmem>>) attributes {dimension_semantics = [#tpu.dimension_semantics<parallel>, #tpu.dimension_semantics<arbitrary>, #tpu.dimension_semantics<arbitrary>], iteration_bounds = array<i64: 1, 4, 1>, scalar_prefetch = 0 : i64, scratch_operands = 1 : i64, tpu.core_type = #tpu.core_type<tc>, window_params = [{transform_indices = @transform_0, window_bounds = array<i64: 16, 32>}, {transform_indices = @transform_1, window_bounds = array<i64: 1, 32, 128>}, {transform_indices = @transform_2, window_bounds = array<i64: 1, 128, 32>}, {transform_indices = @transform_3, window_bounds = array<i64: 1, 16, 1>}, {pipeline_mode = #tpu.pipeline_mode<synchronous>, transform_indices = @transform_4, window_bounds = array<i64: 1, 32>}, {transform_indices = @transform_5, window_bounds = array<i64: 16, 32>}]} {
    %c0_i32 = arith.constant 0 : i32
    %0 = arith.cmpi eq, %arg1, %c0_i32 : i32
    %c0_i32_0 = arith.constant 0 : i32
    %1 = arith.cmpi eq, %arg2, %c0_i32_0 : i32
    %2 = arith.andi %0, %1 : i1
    %3 = arith.extui %2 : i1 to i32
    %c0_i32_1 = arith.constant 0 : i32
    %4 = arith.cmpi ne, %3, %c0_i32_1 : i32
    scf.if %4 {
      %cst_23 = arith.constant 0.000000e+00 : f32
      %37 = vector.broadcast %cst_23 : f32 to vector<16x32xf32>
      %c0_24 = arith.constant 0 : index
      %c0_25 = arith.constant 0 : index
      %38 = vector.load %arg9[%c0_24, %c0_25] : memref<16x32xf32, #tpu.memory_space<vmem>>, vector<16x32xf32>
      tpu.vector_store %arg9[%c0_24, %c0_25], %37 {strides = array<i32>} : memref<16x32xf32, #tpu.memory_space<vmem>>, vector<16x32xf32>,
    } else {
    }
    %c0 = arith.constant 0 : index
    %c0_2 = arith.constant 0 : index
    %5 = vector.load %arg3[%c0, %c0_2] : memref<16x32xf32, #tpu.memory_space<vmem>>, vector<16x32xf32>
    %c0_3 = arith.constant 0 : index
    %c0_4 = arith.constant 0 : index
    %c0_5 = arith.constant 0 : index
    %6 = vector.load %arg4[%c0_3, %c0_4, %c0_5] : memref<1x32x128xf32, #tpu.memory_space<vmem>>, vector<1x32x128xf32>
    %7 = vector.shape_cast %6 : vector<1x32x128xf32> to vector<32x128xf32>
    %cst = arith.constant dense<0.000000e+00> : vector<16x128xf32>
    %8 = tpu.matmul %5, %7, %cst {dimension_numbers = #tpu.dot_dimension_numbers<[1], [0], [0], [1], [0, 0, 1, 1], [], []>} : vector<16x32xf32>, vector<32x128xf32>, vector<16x128xf32> -> vector<16x128xf32>
    %9 = arith.mulf %8, %8 : vector<16x128xf32>
    %10 = arith.mulf %8, %9 : vector<16x128xf32>
    %cst_6 = arith.constant 4.471500e-02 : f32
    %11 = vector.broadcast %cst_6 : f32 to vector<16x128xf32>
    %12 = arith.mulf %11, %10 : vector<16x128xf32>
    %13 = arith.addf %8, %12 : vector<16x128xf32>
    %cst_7 = arith.constant 0.797884583 : f32
    %14 = vector.broadcast %cst_7 : f32 to vector<16x128xf32>
    %15 = arith.mulf %14, %13 : vector<16x128xf32>
    %16 = math.tanh %15 : vector<16x128xf32>
    %cst_8 = arith.constant 1.000000e+00 : f32
    %17 = vector.broadcast %cst_8 : f32 to vector<16x128xf32>
    %18 = arith.addf %17, %16 : vector<16x128xf32>
    %cst_9 = arith.constant 5.000000e-01 : f32
    %19 = vector.broadcast %cst_9 : f32 to vector<16x128xf32>
    %20 = arith.mulf %19, %18 : vector<16x128xf32>
    %21 = arith.mulf %8, %20 : vector<16x128xf32>
    %c0_10 = arith.constant 0 : index
    %c0_11 = arith.constant 0 : index
    %c0_12 = arith.constant 0 : index
    %22 = vector.load %arg5[%c0_10, %c0_11, %c0_12] : memref<1x128x32xf32, #tpu.memory_space<vmem>>, vector<1x128x32xf32>
    %23 = vector.shape_cast %22 : vector<1x128x32xf32> to vector<128x32xf32>
    %cst_13 = arith.constant dense<0.000000e+00> : vector<16x32xf32>
    %24 = tpu.matmul %21, %23, %cst_13 {dimension_numbers = #tpu.dot_dimension_numbers<[1], [0], [0], [1], [0, 0, 1, 1], [], []>} : vector<16x128xf32>, vector<128x32xf32>, vector<16x32xf32> -> vector<16x32xf32>
    %c0_14 = arith.constant 0 : index
    %c0_15 = arith.constant 0 : index
    %c0_16 = arith.constant 0 : index
    %25 = vector.load %arg6[%c0_14, %c0_15, %c0_16] : memref<1x16x1xf32, #tpu.memory_space<vmem>>, vector<1x16x1xf32>
    %26 = vector.shape_cast %25 : vector<1x16x1xf32> to vector<16x1xf32>
    %c0_17 = arith.constant 0 : index
    %c0_18 = arith.constant 0 : index
    %27 = vector.load %arg9[%c0_17, %c0_18] : memref<16x32xf32, #tpu.memory_space<vmem>>, vector<16x32xf32>
    %28 = vector.broadcast %26 : vector<16x1xf32> to vector<16x32xf32>
    %29 = arith.mulf %24, %28 : vector<16x32xf32>
    %30 = arith.addf %27, %29 : vector<16x32xf32>
    %c0_19 = arith.constant 0 : index
    %c0_20 = arith.constant 0 : index
    %31 = vector.load %arg9[%c0_19, %c0_20] : memref<16x32xf32, #tpu.memory_space<vmem>>, vector<16x32xf32>
    tpu.vector_store %arg9[%c0_19, %c0_20], %30 {strides = array<i32>} : memref<16x32xf32, #tpu.memory_space<vmem>>, vector<16x32xf32>,
    %c3_i32 = arith.constant 3 : i32
    %32 = arith.cmpi eq, %arg1, %c3_i32 : i32
    %c0_i32_21 = arith.constant 0 : i32
    %33 = arith.cmpi eq, %arg2, %c0_i32_21 : i32
    %34 = arith.andi %32, %33 : i1
    %35 = arith.extui %34 : i1 to i32
    %c0_i32_22 = arith.constant 0 : i32
    %36 = arith.cmpi ne, %35, %c0_i32_22 : i32
    scf.if %36 {
      %c0_23 = arith.constant 0 : index
      %c0_24 = arith.constant 0 : index
      %37 = vector.load %arg9[%c0_23, %c0_24] : memref<16x32xf32, #tpu.memory_space<vmem>>, vector<16x32xf32>
      %c0_25 = arith.constant 0 : index
      %c0_26 = arith.constant 0 : index
      %38 = vector.load %arg7[%c0_25, %c0_26] : memref<1x32xf32, #tpu.memory_space<vmem>>, vector<1x32xf32>
      %39 = vector.broadcast %38 : vector<1x32xf32> to vector<16x32xf32>
      %40 = arith.addf %37, %39 : vector<16x32xf32>
      %c0_27 = arith.constant 0 : index
      %c0_28 = arith.constant 0 : index
      %41 = vector.load %arg8[%c0_27, %c0_28] : memref<16x32xf32, #tpu.memory_space<vmem>>, vector<16x32xf32>
      tpu.vector_store %arg8[%c0_27, %c0_28], %40 {strides = array<i32>} : memref<16x32xf32, #tpu.memory_space<vmem>>, vector<16x32xf32>,
    } else {
    }
    return
  }
  func.func @transform_0(%arg0: i32, %arg1: i32, %arg2: i32) -> (i32, i32) {
    %c0_i32 = arith.constant 0 : i32
    %c0_i32_0 = arith.constant 0 : i32
    return %arg0, %c0_i32 : i32, i32
  }
  func.func @transform_1(%arg0: i32, %arg1: i32, %arg2: i32) -> (i32, i32, i32) {
    %c0_i32 = arith.constant 0 : i32
    %c0_i32_0 = arith.constant 0 : i32
    return %arg1, %c0_i32, %arg2 : i32, i32, i32
  }
  func.func @transform_2(%arg0: i32, %arg1: i32, %arg2: i32) -> (i32, i32, i32) {
    %c0_i32 = arith.constant 0 : i32
    %c0_i32_0 = arith.constant 0 : i32
    return %arg1, %arg2, %c0_i32 : i32, i32, i32
  }
  func.func @transform_3(%arg0: i32, %arg1: i32, %arg2: i32) -> (i32, i32, i32) {
    %c0_i32 = arith.constant 0 : i32
    %c0_i32_0 = arith.constant 0 : i32
    return %arg1, %arg0, %c0_i32 : i32, i32, i32
  }
  func.func @transform_4(%arg0: i32, %arg1: i32, %arg2: i32) -> (i32, i32) {
    %c0_i32 = arith.constant 0 : i32
    %c0_i32_0 = arith.constant 0 : i32
    %c0_i32_1 = arith.constant 0 : i32
    return %c0_i32, %c0_i32_0 : i32, i32
  }
  func.func @transform_5(%arg0: i32, %arg1: i32, %arg2: i32) -> (i32, i32) {
    %c0_i32 = arith.constant 0 : i32
    %c0_i32_0 = arith.constant 0 : i32
    return %arg0, %c0_i32 : i32, i32
  }
}

</mosaic_0001>

<llo_original>
// kernel: sparse_moe_forward.2
$region0: #{sparse_moe_forward.2}
  #allocation0 [shape = 'u32[]', space=smem, size = 0x4, offset = 0x4, fixed_abs, tag = 'smem constant byte address 0x4 - core index']
  #allocation1 [shape = 'u32[72,128]{1,0:T(1,128)}', space=vmem, size = 0x9000, scoped, tag = 'internal scratch']
  %s0 = inlined_call_operand.hbm [shape: f32[16,32], index: 0, kind: input, shape index: {}]
  %s1 = inlined_call_operand.vmem [shape: f32[32,4], index: 1, kind: input, shape index: {}]
  %s2 = inlined_call_operand.vmem [shape: f32[16,4], index: 2, kind: output, shape index: {}]
  %s3 = sld [smem:[#allocation0]]
  $region22: #{sparse_moe_forward.2} parent=0
    _
  %s5 = ssub.s32 1, %s3
  %s6 = scalar_select 0, %s5, %s3
  $region1: #{sparse_moe_forward.2} parent=0
    #allocation2 [shape = 'u8[8192]{0}', space=vmem, size = 0x2000, scoped, tag = 'input window, operand 0, single buffered']
    #allocation3 [shape = 's32[1]{0}', space=sflag, size = 0x4, scoped, tag = 'scoped memory for sparse_moe_forward.2']
    %7 = vsyncpa [#allocation3], 0
    // Predicated region
    $region2: #{sparse_moe_forward.2} parent=1 // pred_check
      _
    $region3: #{sparse_moe_forward.2} parent=1 // pred_check_branch
      %9 = sbr.rel (0) target = $region5
    $region4: #{sparse_moe_forward.2} parent=1 // pred_region
      %11 = vsyncadd [#allocation3], 0
      %s12 = sshll.u32 %s0, 4
      %s13 = int_to_ptr.hbm [resolvable:$true] %s12
      %s14 = sshll.u32 [#allocation2], 4
      %s15 = int_to_ptr.vmem [resolvable:$true] %s14
      %20 = dma.hbm_to_vmem [thread:$0]  %s13, 256, %s15, [#allocation3], 128, 128, 8
    $region5: #{sparse_moe_forward.2} parent=1 // pred_fallthru
      _
    // Predicated region
    $region6: #{sparse_moe_forward.2} parent=1 // pred_check
      _
    $region7: #{sparse_moe_forward.2} parent=1 // pred_check_branch
      %22 = sbr.rel (0) target = $region9
    $region8: #{sparse_moe_forward.2} parent=1 // pred_region
      _
    $region9: #{sparse_moe_forward.2} parent=1 // pred_fallthru
      _
    // Predicated region
    $region10: #{sparse_moe_forward.2} parent=1 // pred_check
      _
    $region11: #{sparse_moe_forward.2} parent=1 // pred_check_branch
      %24 = sbr.rel (0) target = $region13
    $region12: #{sparse_moe_forward.2} parent=1 // pred_region
      %26 = dma.done [#allocation3], 256
    $region13: #{sparse_moe_forward.2} parent=1 // pred_fallthru
      _
    %v27 = vld [vmem:[#allocation2] sm:$0xff]
    %v28 = vld [vmem:[#allocation2 + $0x8] sm:$0xff]
    %v29 = vld [vmem:[%s1] sm:$0xff]
    %v30 = vld [vmem:[%s1 + $0x8] sm:$0xff]
    %v31 = vld [vmem:[%s1 + $0x10] sm:$0xff]
    %v32 = vld [vmem:[%s1 + $0x18] sm:$0xff]
    %vm33 = vcmask 261120
    %v35 = vsel %vm33, %v27, 0
    %v38 = vsel %vm33, %v28, 0
    %40 = vmatpush.msra.mxu0 0.0
    %41 = vmatpush.msra.mxu0 0.0
    %42 = vmatpush.msra.mxu0 0.0
    %43 = vmatpush.msra.mxu0 0.0
    %44 = vmatpush.msra.mxu0 0.0
    %45 = vmatpush.msra.mxu0 0.0
    %46 = vmatpush.msra.mxu0 0.0
    %47 = vmatpush.msra.mxu0 0.0
    %48 = vmatpush.msra.mxu0 0.0
    %49 = vmatpush.msra.mxu0 0.0
    %50 = vmatpush.msra.mxu0 0.0
    %51 = vmatpush.msra.mxu0 0.0
    %52 = vmatpush.msra.mxu0 %v32
    %53 = vmatpush.msra.mxu0 %v31
    %54 = vmatpush.msra.mxu0 %v30
    %55 = vmatpush.msra.mxu0 %v29
    %56 = vmatmul.f32.gmra.mxu0 %v35
    %v57 = vpop.f32.mrf.mxu0
    %v58 = vadd.f32 0.0, %v57
    %59 = vmatmul.f32.gmra.mxu0 %v38
    %v60 = vpop.f32.mrf.mxu0
    %v61 = vadd.f32 0.0, %v60
    %62 = vdwg.mxu0
    %vm63 = vcmask 31744
    %64 = vst.msk [vmem:[%s2] sm:$0xff] %vm63, %v58
    %65 = vst.msk [vmem:[%s2 + $0x8] sm:$0xff] %vm63, %v61
    // Predicated region
    $region14: #{sparse_moe_forward.2} parent=1 // pred_check
      _
    $region15: #{sparse_moe_forward.2} parent=1 // pred_check_branch
      %67 = sbr.rel (0) target = $region17
    $region16: #{sparse_moe_forward.2} parent=1 // pred_region
      _
    $region17: #{sparse_moe_forward.2} parent=1 // pred_fallthru
      _
    // Predicated region
    $region18: #{sparse_moe_forward.2} parent=1 // pred_check
      _
    $region19: #{sparse_moe_forward.2} parent=1 // pred_check_branch
      %69 = sbr.rel (0) target = $region21
    $region20: #{sparse_moe_forward.2} parent=1 // pred_region
      _
    $region21: #{sparse_moe_forward.2} parent=1 // pred_fallthru
      _
    %70 = vsyncpa [#allocation3], 1

// kernel: sparse_moe_forward.3
$region0: #{sparse_moe_forward.3}
  #allocation0 [shape = 'u32[]', space=smem, size = 0x4, offset = 0x4, fixed_abs, tag = 'smem constant byte address 0x4 - core index']
  #allocation1 [shape = 'u32[72,128]{1,0:T(1,128)}', space=vmem, size = 0x9000, scoped, tag = 'internal scratch']
  #allocation2 [shape = 'f32[16,32]{1,0:T(8,128)}', space=vmem, size = 0x2000, scoped, tag = 'scratch operand']
  %s0 = inlined_call_operand.vmem [shape: f32[16,32], index: 0, kind: input, shape index: {}]
  %s1 = inlined_call_operand.vmem [shape: f32[4,32,128], index: 1, kind: input, shape index: {}]
  %s2 = inlined_call_operand.vmem [shape: f32[4,128,32], index: 2, kind: input, shape index: {}]
  %s3 = inlined_call_operand.vmem [shape: f32[4,16,1], index: 3, kind: input, shape index: {}]
  %s4 = inlined_call_operand.vmem [shape: f32[1,32], index: 4, kind: input, shape index: {}]
  %s5 = inlined_call_operand.hbm [shape: f32[16,32], index: 5, kind: output, shape index: {}]
  %s6 = sld [smem:[#allocation0]]
  $region61: #{sparse_moe_forward.3} parent=0
    _
  %s8 = ssub.s32 1, %s6
  %s9 = scalar_select 0, %s8, %s6
  $region1: #{sparse_moe_forward.3} parent=0
    #allocation3 [shape = 'u8[8192]{0}', space=vmem, size = 0x2000, scoped, tag = 'output window, operand 0, single buffered']
    #allocation4 [shape = 's32[2]{0}', space=sflag, size = 0x8, scoped, tag = 'scoped memory for sparse_moe_forward.3']
    %10 = vsyncpa [#allocation4], 0
    loop: start=0, step=1, limit=6
    $region2: #{sparse_moe_forward.3} parent=1 // loop_pre_header
      _
    $region3: #{sparse_moe_forward.3} parent=1 // loop_header
      %s12 = sphi 0, %s16
      %p13 = scmp.ge.s32.totalorder %s12, 6
      %s19 = sphi 0, %s38
      %s20 = sphi 0, %s34
      %s21 = sphi 0, %s30
      %s22 = sphi 0, %s19
      %s23 = sphi 0, %s20
      %s24 = sphi 0, %s21
      %s25 = sphi 0, %s22
      %s26 = sphi 0, %s23
      %s27 = sphi 0, %s24
      %s41 = sphi 0, %s43
      %s44 = sphi 0, %s41
      %s45 = sphi 0, %s44
      %s61 = sphi 0, %s45
      %s69 = sphi 0, %s71
      %s72 = sphi 0, %s69
      %s73 = sphi 0, %s72
      %s89 = sphi 0, %s73
      %s97 = sphi 0, %s99
      %s100 = sphi 0, %s97
      %s101 = sphi 0, %s100
      %s117 = sphi 0, %s101
      %s125 = sphi 0, %s127
      %s128 = sphi 0, %s125
      %s129 = sphi 0, %s128
      %s145 = sphi 0, %s129
      %s149 = sphi 0, %s149
      %s151 = sphi 0, %s149
      %s152 = sphi 0, %s151
      %s166 = sphi 0, %s152
      %s172 = sphi 0, %s174
      %s175 = sphi 0, %s172
      %s176 = sphi 0, %s175
      %s192 = sphi 0, %s176
    $region4: #{sparse_moe_forward.3} parent=1 // loop_header_branch
      %15 = sbr.rel (%p13) target = $region8
    $region5: #{sparse_moe_forward.3} parent=1 // loop_body
      %s17 = ssub.s32 %s12, 1
      %s18 = ssub.s32 %s12, 2
      %s28 = sadd.s32 1, %s21
      %p29 = scmp.ge.s32.totalorder %s28, 1
      %s30 = scalar_select %p29, 0, %s28
      %s31 = sadd.s32 1, %s20
      %s32 = scalar_select %p29, %s31, %s20
      %p33 = scmp.ge.s32.totalorder %s32, 4
      %s34 = scalar_select %p33, 0, %s32
      %s35 = sadd.s32 1, %s19
      %s36 = scalar_select %p33, %s35, %s19
      %p37 = scmp.ge.s32.totalorder %s36, 1
      %s38 = scalar_select %p37, 0, %s36
      %s39 = ssub.s32 %s19, %s38
      %p40 = scmp.eq.s32.totalorder %s39, 0
      %s42 = sadd.s32 %s41, 1
      %s43 = scalar_select %p40, %s41, %s42
      %p46 = pneg %p40
      %p47 = scmp.eq.s32.totalorder %s12, 3
      %p48 = por %p46, %p47
      %p49 = scmp.ne.s32.totalorder %s41, %s44
      %p50 = scmp.eq.s32.totalorder %s12, 0
      %p51 = por %p49, %p50
      %p52 = scmp.ne.s32.totalorder %s41, %s44
      %p53 = scmp.eq.s32.totalorder %s17, 3
      %p54 = por %p52, %p53
      %p55 = scmp.ne.s32.totalorder %s44, %s45
      %p56 = scmp.eq.s32.totalorder %s17, 0
      %p57 = por %p55, %p56
      %p58 = scmp.ne.s32.totalorder %s44, %s45
      %p59 = scmp.eq.s32.totalorder %s18, 3
      %p60 = por %p58, %p59
      %p62 = scmp.ne.s32.totalorder %s45, %s61
      %p63 = scmp.eq.s32.totalorder %s18, 0
      %p64 = por %p62, %p63
      %s65 = ssub.s32 %s20, %s34
      %s66 = ssub.s32 %s21, %s30
      %s67 = sor.u32 %s65, %s66
      %p68 = scmp.eq.s32.totalorder %s67, 0
      %s70 = sadd.s32 %s69, 1
      %s71 = scalar_select %p68, %s69, %s70
      %p74 = pneg %p68
      %p75 = scmp.eq.s32.totalorder %s12, 3
      %p76 = por %p74, %p75
      %p77 = scmp.ne.s32.totalorder %s69, %s72
      %p78 = scmp.eq.s32.totalorder %s12, 0
      %p79 = por %p77, %p78
      %p80 = scmp.ne.s32.totalorder %s69, %s72
      %p81 = scmp.eq.s32.totalorder %s17, 3
      %p82 = por %p80, %p81
      %p83 = scmp.ne.s32.totalorder %s72, %s73
      %p84 = scmp.eq.s32.totalorder %s17, 0
      %p85 = por %p83, %p84
      %p86 = scmp.ne.s32.totalorder %s72, %s73
      %p87 = scmp.eq.s32.totalorder %s18, 3
      %p88 = por %p86, %p87
      %p90 = scmp.ne.s32.totalorder %s73, %s89
      %p91 = scmp.eq.s32.totalorder %s18, 0
      %p92 = por %p90, %p91
      %s93 = ssub.s32 %s20, %s34
      %s94 = ssub.s32 %s21, %s30
      %s95 = sor.u32 %s93, %s94
      %p96 = scmp.eq.s32.totalorder %s95, 0
      %s98 = sadd.s32 %s97, 1
      %s99 = scalar_select %p96, %s97, %s98
      %p102 = pneg %p96
      %p103 = scmp.eq.s32.totalorder %s12, 3
      %p104 = por %p102, %p103
      %p105 = scmp.ne.s32.totalorder %s97, %s100
      %p106 = scmp.eq.s32.totalorder %s12, 0
      %p107 = por %p105, %p106
      %p108 = scmp.ne.s32.totalorder %s97, %s100
      %p109 = scmp.eq.s32.totalorder %s17, 3
      %p110 = por %p108, %p109
      %p111 = scmp.ne.s32.totalorder %s100, %s101
      %p112 = scmp.eq.s32.totalorder %s17, 0
      %p113 = por %p111, %p112
      %p114 = scmp.ne.s32.totalorder %s100, %s101
      %p115 = scmp.eq.s32.totalorder %s18, 3
      %p116 = por %p114, %p115
      %p118 = scmp.ne.s32.totalorder %s101, %s117
      %p119 = scmp.eq.s32.totalorder %s18, 0
      %p120 = por %p118, %p119
      %s121 = ssub.s32 %s20, %s34
      %s122 = ssub.s32 %s19, %s38
      %s123 = sor.u32 %s121, %s122
      %p124 = scmp.eq.s32.totalorder %s123, 0
      %s126 = sadd.s32 %s125, 1
      %s127 = scalar_select %p124, %s125, %s126
      %p130 = pneg %p124
      %p131 = scmp.eq.s32.totalorder %s12, 3
      %p132 = por %p130, %p131
      %p133 = scmp.ne.s32.totalorder %s125, %s128
      %p134 = scmp.eq.s32.totalorder %s12, 0
      %p135 = por %p133, %p134
      %p136 = scmp.ne.s32.totalorder %s125, %s128
      %p137 = scmp.eq.s32.totalorder %s17, 3
      %p138 = por %p136, %p137
      %p139 = scmp.ne.s32.totalorder %s128, %s129
      %p140 = scmp.eq.s32.totalorder %s17, 0
      %p141 = por %p139, %p140
      %p142 = scmp.ne.s32.totalorder %s128, %s129
      %p143 = scmp.eq.s32.totalorder %s18, 3
      %p144 = por %p142, %p143
      %p146 = scmp.ne.s32.totalorder %s129, %s145
      %p147 = scmp.eq.s32.totalorder %s18, 0
      %p148 = por %p146, %p147
      %s150 = sadd.s32 %s149, 1
      %p153 = scmp.eq.s32.totalorder %s12, 3
      %p154 = scmp.ne.s32.totalorder %s149, %s151
      %p155 = scmp.eq.s32.totalorder %s12, 0
      %p156 = por %p154, %p155
      %p157 = scmp.ne.s32.totalorder %s149, %s151
      %p158 = scmp.eq.s32.totalorder %s17, 3
      %p159 = por %p157, %p158
      %p160 = scmp.ne.s32.totalorder %s151, %s152
      %p161 = scmp.eq.s32.totalorder %s17, 0
      %p162 = por %p160, %p161
      %p163 = scmp.ne.s32.totalorder %s151, %s152
      %p164 = scmp.eq.s32.totalorder %s18, 3
      %p165 = por %p163, %p164
      %p167 = scmp.ne.s32.totalorder %s152, %s166
      %p168 = scmp.eq.s32.totalorder %s18, 0
      %p169 = por %p167, %p168
      %s170 = ssub.s32 %s19, %s38
      %p171 = scmp.eq.s32.totalorder %s170, 0
      %s173 = sadd.s32 %s172, 1
      %s174 = scalar_select %p171, %s172, %s173
      %p177 = pneg %p171
      %p178 = scmp.eq.s32.totalorder %s12, 3
      %p179 = por %p177, %p178
      %p180 = scmp.ne.s32.totalorder %s172, %s175
      %p181 = scmp.eq.s32.totalorder %s12, 0
      %p182 = por %p180, %p181
      %p183 = scmp.ne.s32.totalorder %s172, %s175
      %p184 = scmp.eq.s32.totalorder %s17, 3
      %p185 = por %p183, %p184
      %p186 = scmp.ne.s32.totalorder %s175, %s176
      %p187 = scmp.eq.s32.totalorder %s17, 0
      %p188 = por %p186, %p187
      %p189 = scmp.ne.s32.totalorder %s175, %s176
      %p190 = scmp.eq.s32.totalorder %s18, 3
      %p191 = por %p189, %p190
      %p193 = scmp.ne.s32.totalorder %s176, %s192
      %p194 = scmp.eq.s32.totalorder %s18, 0
      %p195 = por %p193, %p194
      %p196 = scmp.le.s32.totalorder 1, %s12
      %p197 = scmp.lt.s32.totalorder %s12, 5
      %p198 = pnand %p196, %p197
      %p199 = pneg %p198
      // Predicated region
      $region9: #{sparse_moe_forward.3} parent=5 // pred_check
        _
      $region10: #{sparse_moe_forward.3} parent=5 // pred_check_branch
        %201 = sbr.rel (%p198) target = $region12
      $region11: #{sparse_moe_forward.3} parent=5 // pred_region
        %s202 = ssub.s32 %s12, 1
        // Predicated region
        $region13: #{sparse_moe_forward.3} parent=11 // pred_check
          %p203 = pneg %p57
        $region14: #{sparse_moe_forward.3} parent=11 // pred_check_branch
          %205 = sbr.rel (%p203) target = $region16
        $region15: #{sparse_moe_forward.3} parent=11 // pred_region
          %s206 = smul.u32 2, %s22
          %p207 = scmp.lt.s32.totalorder %s206, 1
          %s208 = scalar_select %p207, %s206, 1
          %s209 = smul.addr %s208, 8
          %s210 = scalar_lea.vmem %s0, %s209
          %s211 = smul.u32 2, %s22
        $region16: #{sparse_moe_forward.3} parent=11 // pred_fallthru
          _
        // Predicated region
        $region17: #{sparse_moe_forward.3} parent=11 // pred_check
          %p212 = pneg %p162
        $region18: #{sparse_moe_forward.3} parent=11 // pred_check_branch
          %214 = sbr.rel (%p212) target = $region20
        $region19: #{sparse_moe_forward.3} parent=11 // pred_region
          _
        $region20: #{sparse_moe_forward.3} parent=11 // pred_fallthru
          _
      $region12: #{sparse_moe_forward.3} parent=5 // pred_fallthru
        _
      %p215 = scmp.lt.s32.totalorder %s12, 4
      // Predicated region
      $region21: #{sparse_moe_forward.3} parent=5 // pred_check
        %p216 = pneg %p215
      $region22: #{sparse_moe_forward.3} parent=5 // pred_check_branch
        %218 = sbr.rel (%p216) target = $region24
      $region23: #{sparse_moe_forward.3} parent=5 // pred_region
        // Predicated region
        $region25: #{sparse_moe_forward.3} parent=23 // pred_check
          %p219 = pneg %p79
        $region26: #{sparse_moe_forward.3} parent=23 // pred_check_branch
          %221 = sbr.rel (%p219) target = $region28
        $region27: #{sparse_moe_forward.3} parent=23 // pred_region
          %p222 = scmp.lt.s32.totalorder %s20, 3
          %s223 = scalar_select %p222, %s20, 3
          %p224 = scmp.lt.s32.totalorder %s21, 0
          %s225 = scalar_select %p224, %s21, 0
          %s226 = smul.addr %s223, 4
          %s227 = sadd.s32 %s225, %s226
          %s228 = smul.addr %s227, 8
          %s229 = scalar_lea.vmem %s1, %s228
        $region28: #{sparse_moe_forward.3} parent=23 // pred_fallthru
          _
        // Predicated region
        $region29: #{sparse_moe_forward.3} parent=23 // pred_check
          %p230 = pneg %p107
        $region30: #{sparse_moe_forward.3} parent=23 // pred_check_branch
          %232 = sbr.rel (%p230) target = $region32
        $region31: #{sparse_moe_forward.3} parent=23 // pred_region
          %s233 = smul.u32 16, %s21
          %p234 = scmp.lt.s32.totalorder %s20, 3
          %s235 = scalar_select %p234, %s20, 3
          %p236 = scmp.lt.s32.totalorder %s233, 15
          %s237 = scalar_select %p236, %s233, 15
          %s238 = smul.addr %s235, 16
          %s239 = sadd.s32 %s237, %s238
          %s240 = smul.addr %s239, 8
          %s241 = scalar_lea.vmem %s2, %s240
          %s242 = smul.u32 16, %s21
        $region32: #{sparse_moe_forward.3} parent=23 // pred_fallthru
          _
        // Predicated region
        $region33: #{sparse_moe_forward.3} parent=23 // pred_check
          %p243 = pneg %p135
        $region34: #{sparse_moe_forward.3} parent=23 // pred_check_branch
          %245 = sbr.rel (%p243) target = $region36
        $region35: #{sparse_moe_forward.3} parent=23 // pred_region
          %s246 = smul.u32 2, %s19
          %p247 = scmp.lt.s32.totalorder %s20, 3
          %s248 = scalar_select %p247, %s20, 3
          %p249 = scmp.lt.s32.totalorder %s246, 1
          %s250 = scalar_select %p249, %s246, 1
          %s251 = smul.addr %s248, 2
          %s252 = sadd.s32 %s250, %s251
          %s253 = smul.addr %s252, 8
          %s254 = scalar_lea.vmem %s3, %s253
          %s255 = smul.u32 2, %s19
        $region36: #{sparse_moe_forward.3} parent=23 // pred_fallthru
          _
      $region24: #{sparse_moe_forward.3} parent=5 // pred_fallthru
        _
      %p256 = scmp.le.s32.totalorder 1, %s12
      %p257 = scmp.lt.s32.totalorder %s12, 5
      %p258 = pnand %p256, %p257
      %p259 = pneg %p258
      // Predicated region
      $region37: #{sparse_moe_forward.3} parent=5 // pred_check
        _
      $region38: #{sparse_moe_forward.3} parent=5 // pred_check_branch
        %261 = sbr.rel (%p258) target = $region40
      $region39: #{sparse_moe_forward.3} parent=5 // pred_region
        %s262 = ssub.s32 %s12, 1
        %s263 = smul.u32 2, %s22
        %p264 = scmp.lt.s32.totalorder %s263, 1
        %s265 = scalar_select %p264, %s263, 1
        %s266 = smul.addr %s265, 8
        %s267 = scalar_lea.vmem %s0, %s266
        %p268 = pneg %p57
        %p269 = pneg %p54
        %p270 = scmp.lt.s32.totalorder %s23, 3
        %s271 = scalar_select %p270, %s23, 3
        %p272 = scmp.lt.s32.totalorder %s24, 0
        %s273 = scalar_select %p272, %s24, 0
        %s274 = smul.addr %s271, 4
        %s275 = sadd.s32 %s273, %s274
        %s276 = smul.addr %s275, 8
        %s277 = scalar_lea.vmem %s1, %s276
        %p278 = pneg %p85
        %p279 = pneg %p82
        %s280 = smul.u32 16, %s24
        %p281 = scmp.lt.s32.totalorder %s23, 3
        %s282 = scalar_select %p281, %s23, 3
        %p283 = scmp.lt.s32.totalorder %s280, 15
        %s284 = scalar_select %p283, %s280, 15
        %s285 = smul.addr %s282, 16
        %s286 = sadd.s32 %s284, %s285
        %s287 = smul.addr %s286, 8
        %s288 = scalar_lea.vmem %s2, %s287
        %p289 = pneg %p113
        %p290 = pneg %p110
        %s291 = smul.u32 2, %s22
        %p292 = scmp.lt.s32.totalorder %s23, 3
        %s293 = scalar_select %p292, %s23, 3
        %p294 = scmp.lt.s32.totalorder %s291, 1
        %s295 = scalar_select %p294, %s291, 1
        %s296 = smul.addr %s293, 2
        %s297 = sadd.s32 %s295, %s296
        %s298 = smul.addr %s297, 8
        %s299 = scalar_lea.vmem %s3, %s298
        %p300 = pneg %p141
        %p301 = pneg %p138
        %p302 = pneg %p162
        %p303 = pneg %p159
        %p304 = pneg %p188
        %p305 = pneg %p185
        %s306 = smul.u32 2, %s22
        %p307 = scmp.lt.s32.totalorder %s306, 1
        %s308 = scalar_select %p307, %s306, 1
        %s309 = smul.addr %s308, 8
        %s310 = scalar_lea.vmem %s0, %s309
        %s311 = smul.u32 2, %s22
        %p312 = scmp.lt.s32.totalorder %s23, 3
        %s313 = scalar_select %p312, %s23, 3
        %p314 = scmp.lt.s32.totalorder %s24, 0
        %s315 = scalar_select %p314, %s24, 0
        %s316 = smul.addr %s313, 4
        %s317 = sadd.s32 %s315, %s316
        %s318 = smul.addr %s317, 8
        %s319 = scalar_lea.vmem %s1, %s318
        %s320 = smul.u32 16, %s24
        %p321 = scmp.lt.s32.totalorder %s23, 3
        %s322 = scalar_select %p321, %s23, 3
        %p323 = scmp.lt.s32.totalorder %s320, 15
        %s324 = scalar_select %p323, %s320, 15
        %s325 = smul.addr %s322, 16
        %s326 = sadd.s32 %s324, %s325
        %s327 = smul.addr %s326, 8
        %s328 = scalar_lea.vmem %s2, %s327
        %s329 = smul.u32 16, %s24
        %s330 = smul.u32 2, %s22
        %p331 = scmp.lt.s32.totalorder %s23, 3
        %s332 = scalar_select %p331, %s23, 3
        %p333 = scmp.lt.s32.totalorder %s330, 1
        %s334 = scalar_select %p333, %s330, 1
        %s335 = smul.addr %s332, 2
        %s336 = sadd.s32 %s334, %s335
        %s337 = smul.addr %s336, 8
        %s338 = scalar_lea.vmem %s3, %s337
        %s339 = smul.u32 2, %s22
        %s340 = smul.u32 2, %s22
        %p341 = scmp.eq.s32.totalorder %s23, 0
        %p342 = scmp.eq.s32.totalorder %s24, 0
        %p343 = pnand %p341, %p342
        %p344 = pneg %p343
        // Predicated region
        $region41: #{sparse_moe_forward.3} parent=39 // pred_check
          _
        $region42: #{sparse_moe_forward.3} parent=39 // pred_check_branch
          %346 = sbr.rel (%p343) target = $region44
        $region43: #{sparse_moe_forward.3} parent=39 // pred_region
          %vm347 = vcmask 261120
          %348 = vst.msk [vmem:[#allocation2] sm:$0xff] %vm347, 0.0
          %349 = vst.msk [vmem:[#allocation2 + $0x8] sm:$0xff] %vm347, 0.0
        $region44: #{sparse_moe_forward.3} parent=39 // pred_fallthru
          _
        %v350 = vld [vmem:[%s310] sm:$0xff]
        %v351 = vld [vmem:[%s310 + $0x8] sm:$0xff]
        %v352 = vld [vmem:[%s319] sm:$0xff]
        %v353 = vld [vmem:[%s319 + $0x8] sm:$0xff]
        %v354 = vld [vmem:[%s319 + $0x10] sm:$0xff]
        %v355 = vld [vmem:[%s319 + $0x18] sm:$0xff]
        %vm356 = vcmask 261120
        %v358 = vsel %vm356, %v350, 0
        %v361 = vsel %vm356, %v351, 0
        %363 = vmatpush.msra.mxu0 0.0
        %364 = vmatpush.msra.mxu0 0.0
        %365 = vmatpush.msra.mxu0 0.0
        %366 = vmatpush.msra.mxu0 0.0
        %367 = vmatpush.msra.mxu0 0.0
        %368 = vmatpush.msra.mxu0 0.0
        %369 = vmatpush.msra.mxu0 0.0
        %370 = vmatpush.msra.mxu0 0.0
        %371 = vmatpush.msra.mxu0 0.0
        %372 = vmatpush.msra.mxu0 0.0
        %373 = vmatpush.msra.mxu0 0.0
        %374 = vmatpush.msra.mxu0 0.0
        %375 = vmatpush.msra.mxu0 %v355
        %376 = vmatpush.msra.mxu0 %v354
        %377 = vmatpush.msra.mxu0 %v353
        %378 = vmatpush.msra.mxu0 %v352
        %379 = vmatmul.f32.gmra.mxu0 %v358
        %v380 = vpop.f32.mrf.mxu0
        %v381 = vadd.f32 0.0, %v380
        %382 = vmatmul.f32.gmra.mxu0 %v361
        %v383 = vpop.f32.mrf.mxu0
        %v384 = vadd.f32 0.0, %v383
        %385 = vdwg.mxu0
        %v386 = vmul.f32 %v381, %v381
        %v387 = vmul.f32 %v384, %v384
        %v388 = vmul.f32 %v381, %v386
        %v389 = vmul.f32 %v384, %v387
        %v390 = vmul.f32 %v388, 0.044715
        %v391 = vmul.f32 %v389, 0.044715
        %v392 = vadd.f32 %v381, %v390
        %v393 = vadd.f32 %v384, %v391
        %v394 = vmul.f32 %v392, 0.7978846
        %v395 = vmul.f32 %v393, 0.7978846
        %v396 = vtanh.pop %v394
        %v397 = vtanh.pop %v395
        %v398 = vadd.f32 %v396, 1.0
        %v399 = vadd.f32 %v397, 1.0
        %v400 = vmul.f32 %v398, 0.5
        %v401 = vmul.f32 %v399, 0.5
        %v402 = vmul.f32 %v381, %v400
        %v403 = vmul.f32 %v384, %v401
        %v404 = vld [vmem:[%s328] sm:$0xff]
        %v405 = vld [vmem:[%s328 + $0x8] sm:$0xff]
        %v406 = vld [vmem:[%s328 + $0x10] sm:$0xff]
        %v407 = vld [vmem:[%s328 + $0x18] sm:$0xff]
        %v408 = vld [vmem:[%s328 + $0x20] sm:$0xff]
        %v409 = vld [vmem:[%s328 + $0x28] sm:$0xff]
        %v410 = vld [vmem:[%s328 + $0x30] sm:$0xff]
        %v411 = vld [vmem:[%s328 + $0x38] sm:$0xff]
        %v412 = vld [vmem:[%s328 + $0x40] sm:$0xff]
        %v413 = vld [vmem:[%s328 + $0x48] sm:$0xff]
        %v414 = vld [vmem:[%s328 + $0x50] sm:$0xff]
        %v415 = vld [vmem:[%s328 + $0x58] sm:$0xff]
        %v416 = vld [vmem:[%s328 + $0x60] sm:$0xff]
        %v417 = vld [vmem:[%s328 + $0x68] sm:$0xff]
        %v418 = vld [vmem:[%s328 + $0x70] sm:$0xff]
        %v419 = vld [vmem:[%s328 + $0x78] sm:$0xff]
        %420 = vmatpush.msra.mxu0 %v419
        %421 = vmatpush.msra.mxu0 %v418
        %422 = vmatpush.msra.mxu0 %v417
        %423 = vmatpush.msra.mxu0 %v416
        %424 = vmatpush.msra.mxu0 %v415
        %425 = vmatpush.msra.mxu0 %v414
        %426 = vmatpush.msra.mxu0 %v413
        %427 = vmatpush.msra.mxu0 %v412
        %428 = vmatpush.msra.mxu0 %v411
        %429 = vmatpush.msra.mxu0 %v410
        %430 = vmatpush.msra.mxu0 %v409
        %431 = vmatpush.msra.mxu0 %v408
        %432 = vmatpush.msra.mxu0 %v407
        %433 = vmatpush.msra.mxu0 %v406
        %434 = vmatpush.msra.mxu0 %v405
        %435 = vmatpush.msra.mxu0 %v404
        %436 = vmatmul.f32.gmra.mxu0 %v402
        %v437 = vpop.f32.mrf.mxu0
        %v438 = vadd.f32 0.0, %v437
        %439 = vmatmul.f32.gmra.mxu0 %v403
        %v440 = vpop.f32.mrf.mxu0
        %v441 = vadd.f32 0.0, %v440
        %442 = vdwg.mxu0
        %v443 = vld [vmem:[%s338] sm:$0xff]
        %v444 = vld [vmem:[%s338 + $0x8] sm:$0xff]
        %v445 = vld [vmem:[#allocation2] sm:$0xff]
        %v446 = vld [vmem:[#allocation2 + $0x8] sm:$0xff]
        %448 = vset.pattern.permute.xlu0 0
        %449 = vperm.xlu0 %448, %v443
        %v450 = vpop.permute.xlu0 %449
        %453 = vset.pattern.permute.xlu0 0
        %454 = vperm.xlu0 %453, %v444
        %v455 = vpop.permute.xlu0 %454
        %v457 = vmul.f32 %v438, %v450
        %v458 = vmul.f32 %v441, %v455
        %v459 = vadd.f32 %v445, %v457
        %v460 = vadd.f32 %v446, %v458
        %461 = vst.msk [vmem:[#allocation2] sm:$0xff] %vm356, %v459
        %462 = vst.msk [vmem:[#allocation2 + $0x8] sm:$0xff] %vm356, %v460
        %p463 = scmp.eq.s32.totalorder %s23, 3
        %p464 = pnand %p463, %p342
        %p465 = pneg %p464
        // Predicated region
        $region45: #{sparse_moe_forward.3} parent=39 // pred_check
          _
        $region46: #{sparse_moe_forward.3} parent=39 // pred_check_branch
          %467 = sbr.rel (%p464) target = $region48
        $region47: #{sparse_moe_forward.3} parent=39 // pred_region
          %v468 = vld [vmem:[#allocation2] sm:$0xff]
          %v469 = vld [vmem:[#allocation2 + $0x8] sm:$0xff]
          %v470 = vld [vmem:[%s4] sm:$0x1]
          %v472 = vperm.slane %v470, 0
          %v474 = vadd.f32 %v468, %v472
          %v475 = vadd.f32 %v469, %v472
          %476 = vst.msk [vmem:[#allocation3] sm:$0xff] %vm356, %v474
          %477 = vst.msk [vmem:[#allocation3 + $0x8] sm:$0xff] %vm356, %v475
        $region48: #{sparse_moe_forward.3} parent=39 // pred_fallthru
          _
        // Predicated region
        $region49: #{sparse_moe_forward.3} parent=39 // pred_check
          %p478 = pneg %p185
        $region50: #{sparse_moe_forward.3} parent=39 // pred_check_branch
          %480 = sbr.rel (%p478) target = $region52
        $region51: #{sparse_moe_forward.3} parent=39 // pred_region
          %s481 = smul.u32 2, %s22
          %483 = vsyncadd [#allocation4], 0
          %s484 = smul.addr %s481, 8
          %s485 = scalar_lea.hbm %s5, %s484
          %s486 = sshll.u32 [#allocation3], 4
          %s487 = int_to_ptr.vmem [resolvable:$true] %s486
          %s488 = sshll.u32 %s485, 4
          %s489 = int_to_ptr.hbm [resolvable:$true] %s488
          %494 = dma.vmem_to_hbm [thread:$0]  %s487, 256, %s489, [#allocation4], 128, 128, 8
        $region52: #{sparse_moe_forward.3} parent=39 // pred_fallthru
          _
        // Predicated region
        $region53: #{sparse_moe_forward.3} parent=39 // pred_check
          %p495 = pneg %p185
        $region54: #{sparse_moe_forward.3} parent=39 // pred_check_branch
          %497 = sbr.rel (%p495) target = $region56
        $region55: #{sparse_moe_forward.3} parent=39 // pred_region
          %499 = dma.done [#allocation4], 256
        $region56: #{sparse_moe_forward.3} parent=39 // pred_fallthru
          _
      $region40: #{sparse_moe_forward.3} parent=5 // pred_fallthru
        _
      %p500 = scmp.le.s32.totalorder 2, %s12
      // Predicated region
      $region57: #{sparse_moe_forward.3} parent=5 // pred_check
        %p501 = pneg %p500
      $region58: #{sparse_moe_forward.3} parent=5 // pred_check_branch
        %503 = sbr.rel (%p501) target = $region60
      $region59: #{sparse_moe_forward.3} parent=5 // pred_region
        %s504 = ssub.s32 %s12, 2
      $region60: #{sparse_moe_forward.3} parent=5 // pred_fallthru
        _
    $region6: #{sparse_moe_forward.3} parent=1 // loop_footer
      %s16 = sadd.s32 1, %s12
    $region7: #{sparse_moe_forward.3} parent=1 // loop_footer_branch
      %11 = sbr.rel target = $region3
    $region8: #{sparse_moe_forward.3} parent=1 // loop_exit
      _
    %505 = vsyncpa [#allocation4], 1
    %s506 = scalar_lea.sflag [#allocation4], 1
    %507 = vsyncpa %s506, 1

</llo_original>
